<compile_context>
chip_gen: v7x
topology: tpu7x:2x2x1
jax: 0.10.0
libtpu: 0.0.40
codegen_flags: <defaults>
</compile_context>

<pallas_src>
import functools

import jax
import jax.numpy as jnp
from jax import lax
from jax.experimental import pallas as pl
from jax.experimental.pallas import tpu as pltpu

LAM = 0.1  # present in the torch module but unused in forward

# Combined budget for both double-buffered operand tiles (preds + trues).
_OPERAND_VMEM_BUDGET = 16 * 1024 * 1024


def _round_up(x: int, m: int) -> int:
    return ((x + m - 1) // m) * m


def _choose_tile_n(n: int, c: int, itemsize: int) -> int:
    """Pick the largest row tile whose double-buffered VMEM footprint fits."""
    n_pad = _round_up(max(n, 1), 8)
    c_pad = _round_up(max(c, 1), 128)          # preds tile is lane-padded
    # per-row VMEM bytes: 2 buffers x (preds row + lane-padded int32 trues row)
    per_row = 2 * (c_pad * itemsize + 128 * 4)
    rows = max(8, (_OPERAND_VMEM_BUDGET // per_row) // 8 * 8)
    return int(min(rows, n_pad))


def _recall_loss_kernel(preds_ref, trues_ref, out_ref,
                        tp_acc, t_acc, p_acc, ce_acc,
                        *, n_total: int, needs_mask: bool):
    i = pl.program_id(0)

    @pl.when(i == 0)
    def _init():
        tp_acc[...] = jnp.zeros_like(tp_acc)
        t_acc[...] = jnp.zeros_like(t_acc)
        p_acc[...] = jnp.zeros_like(p_acc)
        ce_acc[...] = jnp.zeros_like(ce_acc)

    preds = preds_ref[...].astype(jnp.float32)   # (T, C); bf16 inputs upcast
    trues = trues_ref[...]                       # (T, 1) int32
    tile_n, c = preds.shape

    if needs_mask:
        rows = i * tile_n + lax.broadcasted_iota(jnp.int32, (tile_n, 1), 0)
        valid = rows < n_total                   # (T, 1) bool
        validf = valid.astype(jnp.float32)
        preds = jnp.where(valid, preds, 0.0)     # neutralize padded-row garbage

    # --- softmax over classes (exact max-shift; approx reciprocal -> EUP) ---
    m = jnp.max(preds, axis=1, keepdims=True)    # (T, 1)
    e = jnp.exp(preds - m)                       # (T, C)
    s = jnp.sum(e, axis=1, keepdims=True)        # (T, 1)
    inv_s = pl.reciprocal(s, approx=True)        # (T, 1)
    if needs_mask:
        inv_s = inv_s * validf                   # zero padded rows of p
    p = e * inv_s                                # (T, C) softmax probs

    # --- one-hot of targets (masked for padded rows) ---
    col = lax.broadcasted_iota(jnp.int32, (tile_n, c), 1)
    one_hot = (col == trues).astype(jnp.float32)
    if needs_mask:
        one_hot = one_hot * validf

    tp = one_hot * p

    # --- per-class partial sums, accumulated across grid steps ---
    tp_acc[...] += jnp.sum(tp, axis=0, keepdims=True)        # (1, C)
    t_acc[...] += jnp.sum(one_hot, axis=0, keepdims=True)    # (1, C)
    p_acc[...] += jnp.sum(p, axis=0, keepdims=True)          # (1, C)

    # --- cross-entropy pieces (exact log for the CE term) ---
    lse = m + jnp.log(s)                                     # (T, 1)
    logit_true = jnp.sum(preds * one_hot, axis=1, keepdims=True)
    ce_rows = lse - logit_true
    if needs_mask:
        ce_rows = ce_rows * validf
    ce_acc[...] += jnp.sum(ce_rows, axis=0, keepdims=True)   # (1, 1)

    # --- finalize: F1 per class + mean CE ---
    @pl.when(i == pl.num_programs(0) - 1)
    def _finalize():
        tp_s = tp_acc[...]
        t_s = t_acc[...]
        p_s = p_acc[...]
        recall = tp_s / (t_s + 1e-8)
        precision = tp_s / (p_s + 1e-8)
        f1 = 2.0 * recall * precision / (precision + recall + 1e-8)
        ce_mean = jnp.sum(ce_acc[...]) * (1.0 / float(n_total))
        out_ref[0, 0] = jnp.sum(f1) + ce_mean


def recall_loss(preds, trues, *, tile_n=None):
    """preds: (N, C) float32/bfloat16 logits; trues: (N,) integer class ids."""
    n, c = preds.shape
    trues_2d = trues.astype(jnp.int32).reshape(n, 1)

    itemsize = jnp.dtype(preds.dtype).itemsize
    if tile_n is None:
        tile_n = _choose_tile_n(n, c, itemsize)
    assert tile_n % 8 == 0, "tile_n must be a multiple of 8 (sublane tiling)"
    grid_n = pl.cdiv(n, tile_n)
    needs_mask = (n % tile_n) != 0

    kernel = functools.partial(
        _recall_loss_kernel, n_total=n, needs_mask=needs_mask)

    cost = pl.CostEstimate(
        flops=8 * n * c,
        transcendentals=n * c,
        bytes_accessed=n * c * itemsize + n * 4 + 4,
    )

    out = pl.pallas_call(
        kernel,
        out_shape=jax.ShapeDtypeStruct((1, 1), jnp.float32),
        grid=(grid_n,),
        in_specs=[
            pl.BlockSpec((tile_n, c), lambda i: (i, 0)),
            pl.BlockSpec((tile_n, 1), lambda i: (i, 0)),
        ],
        out_specs=pl.BlockSpec(memory_space=pltpu.MemorySpace.SMEM),
        scratch_shapes=[
            pltpu.VMEM((1, c), jnp.float32),   # tp_sum accumulator
            pltpu.VMEM((1, c), jnp.float32),   # t_sum accumulator
            pltpu.VMEM((1, c), jnp.float32),   # p_sum accumulator
            pltpu.VMEM((1, 1), jnp.float32),   # ce_sum accumulator
        ],
        compiler_params=pltpu.CompilerParams(
            dimension_semantics=("arbitrary",),
            vmem_limit_bytes=32 * 1024 * 1024,  # safe on v5e/v6e/v7x
        ),
        cost_estimate=cost,
    )(preds, trues_2d)
    return out[0, 0]


def recall_loss_ref(preds, trues):
    """Pure-JAX reference mirroring the PyTorch forward."""
    p = jax.nn.softmax(preds.astype(jnp.float32), axis=1)
    one_hot = jax.nn.one_hot(trues, preds.shape[1], dtype=jnp.float32)
    tp = one_hot * p
    recall = tp.sum(0) / (one_hot.sum(0) + 1e-8)
    precision = tp.sum(0) / (p.sum(0) + 1e-8)
    f1 = 2 * recall * precision / (precision + recall + 1e-8)
    ce = jnp.mean(jax.nn.logsumexp(preds.astype(jnp.float32), axis=1)
                  - jnp.sum(preds.astype(jnp.float32) * one_hot, axis=1))
    return f1.sum() + ce


if __name__ == "__main__":
    key = jax.random.PRNGKey(0)
    k1, k2, k3, k4 = jax.random.split(key, 4)

    # Primary small test (single tile, no masking path).
    N, C = 8, 32
    preds = jax.random.normal(k1, (N, C), dtype=jnp.float32)
    trues = jax.random.randint(k2, (N,), 0, C, dtype=jnp.int32)
    loss = jax.block_until_ready(recall_loss(preds, trues))
    ref = jax.block_until_ready(recall_loss_ref(preds, trues))
    # tolerance loosened slightly for pl.reciprocal(approx=True) in the softmax
    assert jnp.allclose(loss, ref, atol=5e-3, rtol=5e-3), (loss, ref)

    # Multi-tile test (grid over N, partial last tile -> row-masking path).
    N2, C2, TILE = 200, 32, 64
    preds2 = jax.random.normal(k3, (N2, C2), dtype=jnp.float32)
    trues2 = jax.random.randint(k4, (N2,), 0, C2, dtype=jnp.int32)
    loss2 = jax.block_until_ready(recall_loss(preds2, trues2, tile_n=TILE))
    ref2 = jax.block_until_ready(recall_loss_ref(preds2, trues2))
    assert jnp.allclose(loss2, ref2, atol=5e-3, rtol=5e-3), (loss2, ref2)

    # Default tile chooser path (auto-sized tile, single step here).
    loss3 = jax.block_until_ready(recall_loss(preds2, trues2))
    assert jnp.allclose(loss3, ref2, atol=5e-3, rtol=5e-3), (loss3, ref2)

    print("KERNEL_OK")
</pallas_src>

<mosaic_0001>
module attributes {stable_mosaic.version = 11 : i64} {
  func.func @_recall_loss_kernel(%arg0: i32, %arg1: memref<8x32xf32, #tpu.memory_space<vmem>>, %arg2: memref<8x1xi32, #tpu.memory_space<vmem>>, %arg3: memref<1x1xf32, #tpu.memory_space<smem>>, %arg4: memref<1x32xf32, #tpu.memory_space<vmem>>, %arg5: memref<1x32xf32, #tpu.memory_space<vmem>>, %arg6: memref<1x32xf32, #tpu.memory_space<vmem>>, %arg7: memref<1x1xf32, #tpu.memory_space<vmem>>) attributes {dimension_semantics = [#tpu.dimension_semantics<arbitrary>], iteration_bounds = array<i64: 1>, scalar_prefetch = 0 : i64, scratch_operands = 4 : i64, tpu.core_type = #tpu.core_type<tc>, window_params = [{transform_indices = @transform_0, window_bounds = array<i64: 8, 32>}, {transform_indices = @transform_1, window_bounds = array<i64: 8, 1>}, {transform_indices = @transform_2, window_bounds = array<i64: 1, 1>}]} {
    %c0_i32 = arith.constant 0 : i32
    %0 = arith.cmpi eq, %arg0, %c0_i32 : i32
    %1 = arith.extui %0 : i1 to i32
    %c0_i32_0 = arith.constant 0 : i32
    %2 = arith.cmpi ne, %1, %c0_i32_0 : i32
    scf.if %2 {
      %cst_28 = arith.constant 0.000000e+00 : f32
      %50 = vector.broadcast %cst_28 : f32 to vector<1x32xf32>
      %c0_29 = arith.constant 0 : index
      %c0_30 = arith.constant 0 : index
      %51 = vector.load %arg4[%c0_29, %c0_30] : memref<1x32xf32, #tpu.memory_space<vmem>>, vector<1x32xf32>
      tpu.vector_store %arg4[%c0_29, %c0_30], %50 {strides = array<i32>} : memref<1x32xf32, #tpu.memory_space<vmem>>, vector<1x32xf32>,
      %cst_31 = arith.constant 0.000000e+00 : f32
      %52 = vector.broadcast %cst_31 : f32 to vector<1x32xf32>
      %c0_32 = arith.constant 0 : index
      %c0_33 = arith.constant 0 : index
      %53 = vector.load %arg5[%c0_32, %c0_33] : memref<1x32xf32, #tpu.memory_space<vmem>>, vector<1x32xf32>
      tpu.vector_store %arg5[%c0_32, %c0_33], %52 {strides = array<i32>} : memref<1x32xf32, #tpu.memory_space<vmem>>, vector<1x32xf32>,
      %cst_34 = arith.constant 0.000000e+00 : f32
      %54 = vector.broadcast %cst_34 : f32 to vector<1x32xf32>
      %c0_35 = arith.constant 0 : index
      %c0_36 = arith.constant 0 : index
      %55 = vector.load %arg6[%c0_35, %c0_36] : memref<1x32xf32, #tpu.memory_space<vmem>>, vector<1x32xf32>
      tpu.vector_store %arg6[%c0_35, %c0_36], %54 {strides = array<i32>} : memref<1x32xf32, #tpu.memory_space<vmem>>, vector<1x32xf32>,
      %cst_37 = arith.constant 0.000000e+00 : f32
      %56 = vector.broadcast %cst_37 : f32 to vector<1x1xf32>
      %c0_38 = arith.constant 0 : index
      %c0_39 = arith.constant 0 : index
      %57 = vector.load %arg7[%c0_38, %c0_39] : memref<1x1xf32, #tpu.memory_space<vmem>>, vector<1x1xf32>
      tpu.vector_store %arg7[%c0_38, %c0_39], %56 {strides = array<i32>} : memref<1x1xf32, #tpu.memory_space<vmem>>, vector<1x1xf32>,
    } else {
    }
    %c0 = arith.constant 0 : index
    %c0_1 = arith.constant 0 : index
    %3 = vector.load %arg1[%c0, %c0_1] : memref<8x32xf32, #tpu.memory_space<vmem>>, vector<8x32xf32>
    %c0_2 = arith.constant 0 : index
    %c0_3 = arith.constant 0 : index
    %4 = vector.load %arg2[%c0_2, %c0_3] : memref<8x1xi32, #tpu.memory_space<vmem>>, vector<8x1xi32>
    %cst = arith.constant dense<0xFF800000> : vector<8xf32>
    %5 = vector.multi_reduction <maximumf>, %3, %cst [1] : vector<8x32xf32> to vector<8xf32>
    %6 = vector.shape_cast %5 : vector<8xf32> to vector<8x1xf32>
    %7 = vector.broadcast %6 : vector<8x1xf32> to vector<8x32xf32>
    %8 = arith.subf %3, %7 : vector<8x32xf32>
    %9 = math.exp %8 : vector<8x32xf32>
    %cst_4 = arith.constant dense<0.000000e+00> : vector<8xf32>
    %10 = vector.multi_reduction <add>, %9, %cst_4 [1] : vector<8x32xf32> to vector<8xf32>
    %11 = vector.shape_cast %10 : vector<8xf32> to vector<8x1xf32>
    %12 = tpu.reciprocal %11 {approx = true} : vector<8x1xf32> -> vector<8x1xf32>
    %13 = vector.broadcast %12 : vector<8x1xf32> to vector<8x32xf32>
    %14 = arith.mulf %9, %13 : vector<8x32xf32>
    %15 = tpu.iota {dimensions = array<i32: 1>} : vector<8x32xi32>
    %16 = vector.broadcast %4 : vector<8x1xi32> to vector<8x32xi32>
    %17 = arith.cmpi eq, %15, %16 : vector<8x32xi32>
    %18 = arith.extui %17 : vector<8x32xi1> to vector<8x32xi32>
    %19 = arith.sitofp %18 : vector<8x32xi32> to vector<8x32xf32>
    %20 = arith.mulf %19, %14 : vector<8x32xf32>
    %c0_5 = arith.constant 0 : index
    %c0_6 = arith.constant 0 : index
    %21 = vector.load %arg4[%c0_5, %c0_6] : memref<1x32xf32, #tpu.memory_space<vmem>>, vector<1x32xf32>
    %cst_7 = arith.constant dense<0.000000e+00> : vector<32xf32>
    %22 = vector.multi_reduction <add>, %20, %cst_7 [0] : vector<8x32xf32> to vector<32xf32>
    %23 = vector.shape_cast %22 : vector<32xf32> to vector<1x32xf32>
    %24 = arith.addf %21, %23 : vector<1x32xf32>
    %c0_8 = arith.constant 0 : index
    %c0_9 = arith.constant 0 : index
    %25 = vector.load %arg4[%c0_8, %c0_9] : memref<1x32xf32, #tpu.memory_space<vmem>>, vector<1x32xf32>
    tpu.vector_store %arg4[%c0_8, %c0_9], %24 {strides = array<i32>} : memref<1x32xf32, #tpu.memory_space<vmem>>, vector<1x32xf32>,
    %c0_10 = arith.constant 0 : index
    %c0_11 = arith.constant 0 : index
    %26 = vector.load %arg5[%c0_10, %c0_11] : memref<1x32xf32, #tpu.memory_space<vmem>>, vector<1x32xf32>
    %cst_12 = arith.constant dense<0.000000e+00> : vector<32xf32>
    %27 = vector.multi_reduction <add>, %19, %cst_12 [0] : vector<8x32xf32> to vector<32xf32>
    %28 = vector.shape_cast %27 : vector<32xf32> to vector<1x32xf32>
    %29 = arith.addf %26, %28 : vector<1x32xf32>
    %c0_13 = arith.constant 0 : index
    %c0_14 = arith.constant 0 : index
    %30 = vector.load %arg5[%c0_13, %c0_14] : memref<1x32xf32, #tpu.memory_space<vmem>>, vector<1x32xf32>
    tpu.vector_store %arg5[%c0_13, %c0_14], %29 {strides = array<i32>} : memref<1x32xf32, #tpu.memory_space<vmem>>, vector<1x32xf32>,
    %c0_15 = arith.constant 0 : index
    %c0_16 = arith.constant 0 : index
    %31 = vector.load %arg6[%c0_15, %c0_16] : memref<1x32xf32, #tpu.memory_space<vmem>>, vector<1x32xf32>
    %cst_17 = arith.constant dense<0.000000e+00> : vector<32xf32>
    %32 = vector.multi_reduction <add>, %14, %cst_17 [0] : vector<8x32xf32> to vector<32xf32>
    %33 = vector.shape_cast %32 : vector<32xf32> to vector<1x32xf32>
    %34 = arith.addf %31, %33 : vector<1x32xf32>
    %c0_18 = arith.constant 0 : index
    %c0_19 = arith.constant 0 : index
    %35 = vector.load %arg6[%c0_18, %c0_19] : memref<1x32xf32, #tpu.memory_space<vmem>>, vector<1x32xf32>
    tpu.vector_store %arg6[%c0_18, %c0_19], %34 {strides = array<i32>} : memref<1x32xf32, #tpu.memory_space<vmem>>, vector<1x32xf32>,
    %36 = math.log %11 : vector<8x1xf32>
    %37 = arith.addf %6, %36 : vector<8x1xf32>
    %38 = arith.mulf %3, %19 : vector<8x32xf32>
    %cst_20 = arith.constant dense<0.000000e+00> : vector<8xf32>
    %39 = vector.multi_reduction <add>, %38, %cst_20 [1] : vector<8x32xf32> to vector<8xf32>
    %40 = vector.shape_cast %39 : vector<8xf32> to vector<8x1xf32>
    %41 = arith.subf %37, %40 : vector<8x1xf32>
    %c0_21 = arith.constant 0 : index
    %c0_22 = arith.constant 0 : index
    %42 = vector.load %arg7[%c0_21, %c0_22] : memref<1x1xf32, #tpu.memory_space<vmem>>, vector<1x1xf32>
    %cst_23 = arith.constant dense<0.000000e+00> : vector<1xf32>
    %43 = vector.multi_reduction <add>, %41, %cst_23 [0] : vector<8x1xf32> to vector<1xf32>
    %44 = vector.shape_cast %43 : vector<1xf32> to vector<1x1xf32>
    %45 = arith.addf %42, %44 : vector<1x1xf32>
    %c0_24 = arith.constant 0 : index
    %c0_25 = arith.constant 0 : index
    %46 = vector.load %arg7[%c0_24, %c0_25] : memref<1x1xf32, #tpu.memory_space<vmem>>, vector<1x1xf32>
    tpu.vector_store %arg7[%c0_24, %c0_25], %45 {strides = array<i32>} : memref<1x1xf32, #tpu.memory_space<vmem>>, vector<1x1xf32>,
    %c0_i32_26 = arith.constant 0 : i32
    %47 = arith.cmpi eq, %arg0, %c0_i32_26 : i32
    %48 = arith.extui %47 : i1 to i32
    %c0_i32_27 = arith.constant 0 : i32
    %49 = arith.cmpi ne, %48, %c0_i32_27 : i32
    scf.if %49 {
      %c0_28 = arith.constant 0 : index
      %c0_29 = arith.constant 0 : index
      %50 = vector.load %arg4[%c0_28, %c0_29] : memref<1x32xf32, #tpu.memory_space<vmem>>, vector<1x32xf32>
      %c0_30 = arith.constant 0 : index
      %c0_31 = arith.constant 0 : index
      %51 = vector.load %arg5[%c0_30, %c0_31] : memref<1x32xf32, #tpu.memory_space<vmem>>, vector<1x32xf32>
      %c0_32 = arith.constant 0 : index
      %c0_33 = arith.constant 0 : index
      %52 = vector.load %arg6[%c0_32, %c0_33] : memref<1x32xf32, #tpu.memory_space<vmem>>, vector<1x32xf32>
      %cst_34 = arith.constant 9.99999993E-9 : f32
      %53 = vector.broadcast %cst_34 : f32 to vector<1x32xf32>
      %54 = arith.addf %51, %53 : vector<1x32xf32>
      %55 = arith.divf %50, %54 : vector<1x32xf32>
      %cst_35 = arith.constant 9.99999993E-9 : f32
      %56 = vector.broadcast %cst_35 : f32 to vector<1x32xf32>
      %57 = arith.addf %52, %56 : vector<1x32xf32>
      %58 = arith.divf %50, %57 : vector<1x32xf32>
      %cst_36 = arith.constant 2.000000e+00 : f32
      %59 = vector.broadcast %cst_36 : f32 to vector<1x32xf32>
      %60 = arith.mulf %59, %55 : vector<1x32xf32>
      %61 = arith.mulf %60, %58 : vector<1x32xf32>
      %62 = arith.addf %58, %55 : vector<1x32xf32>
      %cst_37 = arith.constant 9.99999993E-9 : f32
      %63 = vector.broadcast %cst_37 : f32 to vector<1x32xf32>
      %64 = arith.addf %62, %63 : vector<1x32xf32>
      %65 = arith.divf %61, %64 : vector<1x32xf32>
      %c0_38 = arith.constant 0 : index
      %c0_39 = arith.constant 0 : index
      %66 = vector.load %arg7[%c0_38, %c0_39] : memref<1x1xf32, #tpu.memory_space<vmem>>, vector<1x1xf32>
      %67 = vector.shape_cast %66 : vector<1x1xf32> to vector<1x1x1xf32>
      %cst_40 = arith.constant dense<0.000000e+00> : vector<1xf32>
      %68 = vector.multi_reduction <add>, %67, %cst_40 [1, 2] : vector<1x1x1xf32> to vector<1xf32>
      %69 = vector.shape_cast %68 : vector<1xf32> to vector<1x1x1xf32>
      %70 = vector.extract %69[0, 0, 0] : f32 from vector<1x1x1xf32>
      %cst_41 = arith.constant 1.250000e-01 : f32
      %71 = arith.mulf %70, %cst_41 : f32
      %72 = vector.shape_cast %65 : vector<1x32xf32> to vector<1x1x32xf32>
      %cst_42 = arith.constant dense<0.000000e+00> : vector<1xf32>
      %73 = vector.multi_reduction <add>, %72, %cst_42 [1, 2] : vector<1x1x32xf32> to vector<1xf32>
      %74 = vector.shape_cast %73 : vector<1xf32> to vector<1x1x1xf32>
      %75 = vector.extract %74[0, 0, 0] : f32 from vector<1x1x1xf32>
      %76 = arith.addf %75, %71 : f32
      %c0_43 = arith.constant 0 : index
      %c0_44 = arith.constant 0 : index
      %77 = memref.load %arg3[%c0_43, %c0_44] : memref<1x1xf32, #tpu.memory_space<smem>>
      memref.store %76, %arg3[%c0_43, %c0_44] : memref<1x1xf32, #tpu.memory_space<smem>>
    } else {
    }
    return
  }
  func.func @transform_0(%arg0: i32) -> (i32, i32) {
    %c0_i32 = arith.constant 0 : i32
    %c0_i32_0 = arith.constant 0 : i32
    return %arg0, %c0_i32 : i32, i32
  }
  func.func @transform_1(%arg0: i32) -> (i32, i32) {
    %c0_i32 = arith.constant 0 : i32
    %c0_i32_0 = arith.constant 0 : i32
    return %arg0, %c0_i32 : i32, i32
  }
  func.func @transform_2(%arg0: i32) -> (i32, i32) {
    %c0_i32 = arith.constant 0 : i32
    %c0_i32_0 = arith.constant 0 : i32
    %c0_i32_1 = arith.constant 0 : i32
    return %c0_i32, %c0_i32_0 : i32, i32
  }
}

</mosaic_0001>

<llo_original>
// kernel: tpu_custom_call.1
$region0: #{tpu_custom_call.1}
  #allocation0 [shape = 'u32[]', space=smem, size = 0x4, offset = 0x4, fixed_abs, tag = 'smem constant byte address 0x4 - core index']
  #allocation1 [shape = 'u32[144,128]{1,0:T(1,128)}', space=vmem, size = 0x12000, scoped, tag = 'internal scratch']
  #allocation2 [shape = 'f32[1,32]{1,0:T(1,128)}', space=vmem, size = 0x200, scoped, tag = 'scratch operand']
  #allocation3 [shape = 'f32[1,32]{1,0:T(1,128)}', space=vmem, size = 0x200, scoped, tag = 'scratch operand']
  #allocation4 [shape = 'f32[1,32]{1,0:T(1,128)}', space=vmem, size = 0x200, scoped, tag = 'scratch operand']
  #allocation5 [shape = 'f32[1,1]{1,0:T(1,128)}', space=vmem, size = 0x200, scoped, tag = 'scratch operand']
  %s0 = inlined_call_operand.vmem [shape: f32[8,32], index: 0, kind: input, shape index: {}]
  %s1 = inlined_call_operand.vmem [shape: s32[8,1], index: 1, kind: input, shape index: {}]
  %s2 = inlined_call_operand.hbm [shape: f32[1,1], index: 2, kind: output, shape index: {}]
  %s3 = sld [smem:[#allocation0]]
  $region26: #{tpu_custom_call.1} parent=0
    _
  %s5 = ssub.s32 1, %s3
  %s6 = scalar_select 0, %s5, %s3
  $region1: #{tpu_custom_call.1} parent=0
    #allocation6 [shape = 'u8[512]{0}', space=smem, size = 0x200, scoped, tag = 'output window, operand 0, single buffered']
    #allocation7 [shape = 's32[1]{0}', space=sflag, size = 0x4, scoped, tag = 'scoped memory for tpu_custom_call.1']
    %7 = vsyncpa [#allocation7], 0
    // Predicated region
    $region2: #{tpu_custom_call.1} parent=1 // pred_check
      _
    $region3: #{tpu_custom_call.1} parent=1 // pred_check_branch
      %9 = sbr.rel (0) target = $region5
    $region4: #{tpu_custom_call.1} parent=1 // pred_region
      _
    $region5: #{tpu_custom_call.1} parent=1 // pred_fallthru
      _
    // Predicated region
    $region6: #{tpu_custom_call.1} parent=1 // pred_check
      _
    $region7: #{tpu_custom_call.1} parent=1 // pred_check_branch
      %11 = sbr.rel (0) target = $region9
    $region8: #{tpu_custom_call.1} parent=1 // pred_region
      _
    $region9: #{tpu_custom_call.1} parent=1 // pred_fallthru
      _
    %p12 = scmp.eq.s32.totalorder 0, 0
    // Predicated region
    $region10: #{tpu_custom_call.1} parent=1 // pred_check
      %p13 = pneg %p12
    $region11: #{tpu_custom_call.1} parent=1 // pred_check_branch
      %15 = sbr.rel (%p13) target = $region13
    $region12: #{tpu_custom_call.1} parent=1 // pred_region
      %vm16 = vcmask 253952
      %17 = vst.msk [vmem:[#allocation2] sm:$0x1] %vm16, 0.0
      %18 = vst.msk [vmem:[#allocation3] sm:$0x1] %vm16, 0.0
      %19 = vst.msk [vmem:[#allocation4] sm:$0x1] %vm16, 0.0
      %vm20 = vcmask 0
      %21 = vst.msk [vmem:[#allocation5] sm:$0x1] %vm20, 0.0
    $region13: #{tpu_custom_call.1} parent=1 // pred_fallthru
      _
    %v22 = vld [vmem:[%s0] sm:$0xff]
    %v23 = vld [vmem:[%s1] sm:$0xff]
    %vm24 = vcmask 261120
    %v25 = vsel %vm24, %v22, -inf
    %26 = vmax.xlane.f32.xlu0 %v25
    %v27 = vpop.xlane.xlu0 %26
    %v28 = vsub.f32 %v22, %v27
    %v29 = vmul.f32 %v28, 1.442695
    %v30 = vpow.pop %v29
    %v31 = vsel %vm24, %v30, 0.0
    %32 = vadd.xlane.f32.xlu0 %v31
    %v33 = vpop.xlane.xlu0 %32
    %v34 = vrcp.pop %v33
    %v35 = vmul.f32 %v30, %v34
    %v36 = vlaneseq
    %v37 = vand.u32 %v36, 127
    %38 = vset.pattern.permute.xlu0 0
    %39 = vperm.xlu0 %38, %v23
    %v40 = vpop.permute.xlu0 %39
    %vm41 = vcmp.eq.s32.totalorder %v37, %v40
    %v42 = vsel %vm41, 1, 0
    %v43 = vcvt.s32.f32 %v42
    %v44 = vmul.f32 %v43, %v35
    %v45 = vld [vmem:[#allocation2] sm:$0x1]
    %v46 = vsel %vm24, %v44, 0.0
    %v47 = vrot.slane %v46, 4
    %v48 = vadd.f32 %v46, %v47
    %v49 = vrot.slane %v48, 2
    %v50 = vadd.f32 %v48, %v49
    %v51 = vrot.slane %v50, 1
    %v52 = vadd.f32 %v50, %v51
    %v53 = vadd.f32 %v45, %v52
    %vm54 = vcmask 253952
    %55 = vst.msk [vmem:[#allocation2] sm:$0x1] %vm54, %v53
    %v56 = vld [vmem:[#allocation3] sm:$0x1]
    %v57 = vsel %vm24, %v43, 0.0
    %v58 = vrot.slane %v57, 4
    %v59 = vadd.f32 %v57, %v58
    %v60 = vrot.slane %v59, 2
    %v61 = vadd.f32 %v59, %v60
    %v62 = vrot.slane %v61, 1
    %v63 = vadd.f32 %v61, %v62
    %v64 = vadd.f32 %v56, %v63
    %65 = vst.msk [vmem:[#allocation3] sm:$0x1] %vm54, %v64
    %v66 = vld [vmem:[#allocation4] sm:$0x1]
    %v67 = vsel %vm24, %v35, 0.0
    %v68 = vrot.slane %v67, 4
    %v69 = vadd.f32 %v67, %v68
    %v70 = vrot.slane %v69, 2
    %v71 = vadd.f32 %v69, %v70
    %v72 = vrot.slane %v71, 1
    %v73 = vadd.f32 %v71, %v72
    %v74 = vadd.f32 %v66, %v73
    %75 = vst.msk [vmem:[#allocation4] sm:$0x1] %vm54, %v74
    %v76 = vlog2.pop %v33
    %v77 = vmul.f32 %v76, 0.6931472
    %v78 = vadd.f32 %v27, %v77
    %v79 = vmul.f32 %v22, %v43
    %v80 = vsel %vm24, %v79, 0.0
    %81 = vadd.xlane.f32.xlu0 %v80
    %v82 = vpop.xlane.xlu0 %81
    %v83 = vsub.f32 %v78, %v82
    %v84 = vld [vmem:[#allocation5] sm:$0x1]
    %v85 = vrot.slane %v83, 4
    %v86 = vadd.f32 %v83, %v85
    %v87 = vrot.slane %v86, 2
    %v88 = vadd.f32 %v86, %v87
    %v89 = vrot.slane %v88, 1
    %v90 = vadd.f32 %v88, %v89
    %v91 = vadd.f32 %v84, %v90
    %vm92 = vcmask 0
    %93 = vst.msk [vmem:[#allocation5] sm:$0x1] %vm92, %v91
    // Predicated region
    $region14: #{tpu_custom_call.1} parent=1 // pred_check
      %p94 = pneg %p12
    $region15: #{tpu_custom_call.1} parent=1 // pred_check_branch
      %96 = sbr.rel (%p94) target = $region17
    $region16: #{tpu_custom_call.1} parent=1 // pred_region
      %v97 = vld [vmem:[#allocation2] sm:$0x1]
      %v98 = vld [vmem:[#allocation3] sm:$0x1]
      %v99 = vld [vmem:[#allocation4] sm:$0x1]
      %v100 = vadd.f32 %v98, 1e-08
      %v101 = vrcp.pop %v100
      %v102 = vmul.f32 %v97, %v101
      %v103 = vadd.f32 %v99, 1e-08
      %v104 = vrcp.pop %v103
      %v105 = vmul.f32 %v97, %v104
      %v106 = vmul.f32 %v102, 2.0
      %v107 = vmul.f32 %v106, %v105
      %v108 = vadd.f32 %v105, %v102
      %v109 = vadd.f32 %v108, 1e-08
      %v110 = vrcp.pop %v109
      %v111 = vmul.f32 %v107, %v110
      %v112 = vld [vmem:[#allocation5] sm:$0x1]
      %v113 = vadd.f32 %v112, 0.0
      %s114 = vtos %v113
      %s115 = smul.f32 %s114, 0.125
      %v116 = vsel %vm54, %v111, 0.0
      %117 = vadd.xlane.f32.xlu0 %v116
      %v118 = vpop.xlane.xlu0 %117
      %v119 = vrot.slane %v118, 4
      %v120 = vadd.f32 %v118, %v119
      %v121 = vrot.slane %v120, 2
      %v122 = vadd.f32 %v120, %v121
      %v123 = vrot.slane %v122, 1
      %v124 = vadd.f32 %v122, %v123
      %s125 = vtos %v124
      %s126 = sadd.f32 %s125, %s115
      %s127 = scalar_lea.smem [#allocation6], 0
      %128 = sst [smem:[%s127]] %s126
    $region17: #{tpu_custom_call.1} parent=1 // pred_fallthru
      _
    // Predicated region
    $region18: #{tpu_custom_call.1} parent=1 // pred_check
      _
    $region19: #{tpu_custom_call.1} parent=1 // pred_check_branch
      %130 = sbr.rel (0) target = $region21
    $region20: #{tpu_custom_call.1} parent=1 // pred_region
      %s132 = ssub.s32 16, 16
      %133 = vsyncadd [#allocation7], %s132
      %136 = dma.smem_to_hbm [#allocation6], 16, %s2, [#allocation7]
    $region21: #{tpu_custom_call.1} parent=1 // pred_fallthru
      _
    // Predicated region
    $region22: #{tpu_custom_call.1} parent=1 // pred_check
      _
    $region23: #{tpu_custom_call.1} parent=1 // pred_check_branch
      %138 = sbr.rel (0) target = $region25
    $region24: #{tpu_custom_call.1} parent=1 // pred_region
      %139 = dma.done [#allocation7], 16
    $region25: #{tpu_custom_call.1} parent=1 // pred_fallthru
      _
    %140 = sfence
    %141 = vsyncpa [#allocation7], 1

</llo_original>
